<compile_context>
chip_gen: v6e
topology: v6e:2x2x1
jax: 0.10.0
libtpu: 0.0.40
codegen_flags: <defaults>
</compile_context>

<pallas_src>
import functools

import jax
import jax.numpy as jnp
from jax.experimental import pallas as pl
from jax.experimental.pallas import tpu as pltpu

LOG_STD_MIN = -20.0
LOG_STD_MAX = 2.0
LEAKY_SLOPE = 0.01   # torch.nn.LeakyReLU default negative_slope
HPAD = 128           # all weight lane-widths padded to one vreg lane width


def actor_kernel(x_ref, wp_ref, bp_ref, out_ref, *, encode_size, hpad):
    x = x_ref[...]                                           # [TB, E]

    # Static, sublane-aligned slices of the packed weight slab.
    w1 = wp_ref[0:encode_size, :]                            # [E, 128]
    w2 = wp_ref[encode_size:encode_size + hpad, :]           # [128, 128]
    wh = wp_ref[encode_size + hpad:encode_size + 2 * hpad, :]  # [128, 128]

    # lin[0]: Linear(E, 2H) + LeakyReLU   (lanes 64:128 stay exactly 0)
    h = jnp.dot(x, w1, preferred_element_type=jnp.float32) + bp_ref[0:1, :]
    h = jnp.where(h > 0, h, LEAKY_SLOPE * h)

    # lin[2]: Linear(2H, 2H) + LeakyReLU
    h = jnp.dot(h, w2, preferred_element_type=jnp.float32) + bp_ref[1:2, :]
    h = jnp.where(h > 0, h, LEAKY_SLOPE * h)

    # fused heads: [mu | log_std | zero padding] in one matmul
    out = jnp.dot(h, wh, preferred_element_type=jnp.float32) + bp_ref[2:3, :]

    # clamp only the log_std lanes (>= 2); mu lanes untouched, pad lanes are 0
    lane = jax.lax.broadcasted_iota(jnp.int32, out.shape, 1)
    out = jnp.where(lane >= 2,
                    jnp.clip(out, LOG_STD_MIN, LOG_STD_MAX),
                    out)
    out_ref[...] = out.astype(out_ref.dtype)


def actor_forward(encode, packed_w, packed_b, *, block_b=128):
    """encode: [B, E] f32 -> (mu [B, 2], log_std [B, 2])."""
    B, E = encode.shape
    hpad = packed_w.shape[1]

    # batch tile: multiple of 8 sublanes, capped at block_b rows per grid step
    TB = min(block_b, ((B + 7) // 8) * 8)
    Bp = ((B + TB - 1) // TB) * TB
    if Bp != B:
        encode = jnp.pad(encode, ((0, Bp - B), (0, 0)))

    kernel = functools.partial(actor_kernel, encode_size=E, hpad=hpad)
    out = pl.pallas_call(
        kernel,
        out_shape=jax.ShapeDtypeStruct((Bp, hpad), jnp.float32),
        grid=(Bp // TB,),
        in_specs=[
            pl.BlockSpec((TB, E), lambda i: (i, 0)),          # batch-tiled input
            pl.BlockSpec(packed_w.shape, lambda i: (0, 0)),   # weights resident
            pl.BlockSpec(packed_b.shape, lambda i: (0, 0)),   # biases resident
        ],
        out_specs=pl.BlockSpec((TB, hpad), lambda i: (i, 0)), # lane-dense output
        compiler_params=pltpu.CompilerParams(
            dimension_semantics=("parallel",)),
    )(encode, packed_w, packed_b)

    out = out[:B]
    return out[:, 0:2], out[:, 2:4]


def init_params(key, encode_size, hidden_size):
    """Deterministic synthetic init (stand-in for init_weights)."""
    h2 = hidden_size * 2
    ks = jax.random.split(key, 8)

    def lin(kw, kb, fan_in, fan_out):
        scale = 1.0 / jnp.sqrt(fan_in)
        w = jax.random.uniform(kw, (fan_in, fan_out), jnp.float32, -scale, scale)
        b = jax.random.uniform(kb, (1, fan_out), jnp.float32, -scale, scale)
        return w, b

    w1, b1 = lin(ks[0], ks[1], encode_size, h2)
    w2, b2 = lin(ks[2], ks[3], h2, h2)
    wmu, bmu = lin(ks[4], ks[5], h2, 2)
    wls, bls = lin(ks[6], ks[7], h2, 2)
    return (w1, b1, w2, b2, wmu, bmu, wls, bls)


def pack_params(params, encode_size, hpad=HPAD):
    """Pack 8 param arrays into one weight slab and one bias slab.

    Weight slab rows: [w1 (E rows) | w2 (hpad rows) | w_head (hpad rows)],
    every piece zero-padded to hpad lanes (and hpad K-rows for w2/w_head) so
    the kernel never slices lanes. Head = concat(wmu, wls) in lanes 0:4.
    """
    w1, b1, w2, b2, wmu, bmu, wls, bls = params
    wh = jnp.concatenate([wmu, wls], axis=1)    # [h2, 4]
    bh = jnp.concatenate([bmu, bls], axis=1)    # [1, 4]

    def pad_to(a, rows, cols):
        z = jnp.zeros((rows, cols), jnp.float32)
        return z.at[:a.shape[0], :a.shape[1]].set(a)

    wp = jnp.concatenate([
        pad_to(w1, encode_size, hpad),
        pad_to(w2, hpad, hpad),
        pad_to(wh, hpad, hpad),
    ], axis=0)                                   # [E + 2*hpad, hpad]
    bp = jnp.concatenate([
        pad_to(b1, 1, hpad),
        pad_to(b2, 1, hpad),
        pad_to(bh, 1, hpad),
    ], axis=0)                                   # [3, hpad]
    return wp, bp


if __name__ == "__main__":
    # Shapes consistent with the module: args.encode_size=32,
    # args.hidden_size=32 (so hidden*2 = 64), batch=8.
    ENCODE_SIZE, HIDDEN_SIZE, BATCH = 32, 32, 8

    key = jax.random.PRNGKey(0)
    k_params, k_x = jax.random.split(key)
    params = init_params(k_params, ENCODE_SIZE, HIDDEN_SIZE)
    packed_w, packed_b = pack_params(params, ENCODE_SIZE)
    encode = jax.random.normal(k_x, (BATCH, ENCODE_SIZE), jnp.float32)

    mu, log_std = actor_forward(encode, packed_w, packed_b)
    jax.block_until_ready((mu, log_std))

    # Pure-JAX reference check against the unpacked params.
    (w1, b1, w2, b2, wmu, bmu, wls, bls) = params
    leaky = lambda v: jnp.where(v > 0, v, LEAKY_SLOPE * v)
    h = leaky(encode @ w1 + b1)
    h = leaky(h @ w2 + b2)
    mu_ref = h @ wmu + bmu
    ls_ref = jnp.clip(h @ wls + bls, LOG_STD_MIN, LOG_STD_MAX)

    assert mu.shape == (BATCH, 2) and log_std.shape == (BATCH, 2)
    assert jnp.allclose(mu, mu_ref, atol=1e-5)
    assert jnp.allclose(log_std, ls_ref, atol=1e-5)

    print("KERNEL_OK")
</pallas_src>

<mosaic_0001>
module attributes {stable_mosaic.version = 11 : i64} {
  func.func @actor_kernel(%arg0: i32, %arg1: memref<8x32xf32, #tpu.memory_space<vmem>>, %arg2: memref<288x128xf32, #tpu.memory_space<vmem>>, %arg3: memref<3x128xf32, #tpu.memory_space<vmem>>, %arg4: memref<8x128xf32, #tpu.memory_space<vmem>>) attributes {dimension_semantics = [#tpu.dimension_semantics<parallel>], iteration_bounds = array<i64: 1>, scalar_prefetch = 0 : i64, scratch_operands = 0 : i64, tpu.core_type = #tpu.core_type<tc>, window_params = [{transform_indices = @transform_0, window_bounds = array<i64: 8, 32>}, {pipeline_mode = #tpu.pipeline_mode<synchronous>, transform_indices = @transform_1, window_bounds = array<i64: 288, 128>}, {pipeline_mode = #tpu.pipeline_mode<synchronous>, transform_indices = @transform_2, window_bounds = array<i64: 3, 128>}, {transform_indices = @transform_3, window_bounds = array<i64: 8, 128>}]} {
    %c0 = arith.constant 0 : index
    %c0_0 = arith.constant 0 : index
    %0 = vector.load %arg1[%c0, %c0_0] : memref<8x32xf32, #tpu.memory_space<vmem>>, vector<8x32xf32>
    %c0_1 = arith.constant 0 : index
    %c0_2 = arith.constant 0 : index
    %1 = vector.load %arg2[%c0_1, %c0_2] : memref<288x128xf32, #tpu.memory_space<vmem>>, vector<32x128xf32>
    %c32 = arith.constant 32 : index
    %c0_3 = arith.constant 0 : index
    %2 = vector.load %arg2[%c32, %c0_3] : memref<288x128xf32, #tpu.memory_space<vmem>>, vector<128x128xf32>
    %c160 = arith.constant 160 : index
    %c0_4 = arith.constant 0 : index
    %3 = vector.load %arg2[%c160, %c0_4] : memref<288x128xf32, #tpu.memory_space<vmem>>, vector<128x128xf32>
    %cst = arith.constant dense<0.000000e+00> : vector<8x128xf32>
    %4 = tpu.matmul %0, %1, %cst {dimension_numbers = #tpu.dot_dimension_numbers<[1], [0], [0], [1], [0, 0, 1, 1], [], []>} : vector<8x32xf32>, vector<32x128xf32>, vector<8x128xf32> -> vector<8x128xf32>
    %c0_5 = arith.constant 0 : index
    %c0_6 = arith.constant 0 : index
    %5 = vector.load %arg3[%c0_5, %c0_6] : memref<3x128xf32, #tpu.memory_space<vmem>>, vector<1x128xf32>
    %6 = vector.broadcast %5 : vector<1x128xf32> to vector<8x128xf32>
    %7 = arith.addf %4, %6 : vector<8x128xf32>
    %cst_7 = arith.constant 0.000000e+00 : f32
    %8 = vector.broadcast %cst_7 : f32 to vector<8x128xf32>
    %9 = arith.cmpf ogt, %7, %8 : vector<8x128xf32>
    %cst_8 = arith.constant 0.00999999977 : f32
    %10 = vector.broadcast %cst_8 : f32 to vector<8x128xf32>
    %11 = arith.mulf %10, %7 : vector<8x128xf32>
    %12 = arith.select %9, %7, %11 : vector<8x128xi1>, vector<8x128xf32>
    %cst_9 = arith.constant dense<0.000000e+00> : vector<8x128xf32>
    %13 = tpu.matmul %12, %2, %cst_9 {dimension_numbers = #tpu.dot_dimension_numbers<[1], [0], [0], [1], [0, 0, 1, 1], [], []>} : vector<8x128xf32>, vector<128x128xf32>, vector<8x128xf32> -> vector<8x128xf32>
    %c1 = arith.constant 1 : index
    %c0_10 = arith.constant 0 : index
    %14 = vector.load %arg3[%c1, %c0_10] : memref<3x128xf32, #tpu.memory_space<vmem>>, vector<1x128xf32>
    %15 = vector.broadcast %14 : vector<1x128xf32> to vector<8x128xf32>
    %16 = arith.addf %13, %15 : vector<8x128xf32>
    %cst_11 = arith.constant 0.000000e+00 : f32
    %17 = vector.broadcast %cst_11 : f32 to vector<8x128xf32>
    %18 = arith.cmpf ogt, %16, %17 : vector<8x128xf32>
    %cst_12 = arith.constant 0.00999999977 : f32
    %19 = vector.broadcast %cst_12 : f32 to vector<8x128xf32>
    %20 = arith.mulf %19, %16 : vector<8x128xf32>
    %21 = arith.select %18, %16, %20 : vector<8x128xi1>, vector<8x128xf32>
    %cst_13 = arith.constant dense<0.000000e+00> : vector<8x128xf32>
    %22 = tpu.matmul %21, %3, %cst_13 {dimension_numbers = #tpu.dot_dimension_numbers<[1], [0], [0], [1], [0, 0, 1, 1], [], []>} : vector<8x128xf32>, vector<128x128xf32>, vector<8x128xf32> -> vector<8x128xf32>
    %c2 = arith.constant 2 : index
    %c0_14 = arith.constant 0 : index
    %23 = vector.load %arg3[%c2, %c0_14] : memref<3x128xf32, #tpu.memory_space<vmem>>, vector<1x128xf32>
    %24 = vector.broadcast %23 : vector<1x128xf32> to vector<8x128xf32>
    %25 = arith.addf %22, %24 : vector<8x128xf32>
    %26 = tpu.iota {dimensions = array<i32: 1>} : vector<8x128xi32>
    %c2_i32 = arith.constant 2 : i32
    %27 = vector.broadcast %c2_i32 : i32 to vector<8x128xi32>
    %28 = arith.cmpi sge, %26, %27 : vector<8x128xi32>
    %cst_15 = arith.constant -2.000000e+01 : f32
    %cst_16 = arith.constant 2.000000e+00 : f32
    %29 = vector.broadcast %cst_15 : f32 to vector<8x128xf32>
    %30 = arith.maximumf %29, %25 : vector<8x128xf32>
    %31 = vector.broadcast %cst_16 : f32 to vector<8x128xf32>
    %32 = arith.minimumf %31, %30 : vector<8x128xf32>
    %33 = arith.select %28, %32, %25 : vector<8x128xi1>, vector<8x128xf32>
    %c0_17 = arith.constant 0 : index
    %c0_18 = arith.constant 0 : index
    %34 = vector.load %arg4[%c0_17, %c0_18] : memref<8x128xf32, #tpu.memory_space<vmem>>, vector<8x128xf32>
    tpu.vector_store %arg4[%c0_17, %c0_18], %33 {strides = array<i32>} : memref<8x128xf32, #tpu.memory_space<vmem>>, vector<8x128xf32>,
    return
  }
  func.func @transform_0(%arg0: i32) -> (i32, i32) {
    %c0_i32 = arith.constant 0 : i32
    %c0_i32_0 = arith.constant 0 : i32
    return %arg0, %c0_i32 : i32, i32
  }
  func.func @transform_1(%arg0: i32) -> (i32, i32) {
    %c0_i32 = arith.constant 0 : i32
    %c0_i32_0 = arith.constant 0 : i32
    %c0_i32_1 = arith.constant 0 : i32
    return %c0_i32, %c0_i32_0 : i32, i32
  }
  func.func @transform_2(%arg0: i32) -> (i32, i32) {
    %c0_i32 = arith.constant 0 : i32
    %c0_i32_0 = arith.constant 0 : i32
    %c0_i32_1 = arith.constant 0 : i32
    return %c0_i32, %c0_i32_0 : i32, i32
  }
  func.func @transform_3(%arg0: i32) -> (i32, i32) {
    %c0_i32 = arith.constant 0 : i32
    %c0_i32_0 = arith.constant 0 : i32
    return %arg0, %c0_i32 : i32, i32
  }
}

</mosaic_0001>

<llo_original>
// kernel: tpu_custom_call.1
$region0: #{tpu_custom_call.1}
  #allocation0 [shape = 'u32[]', space=smem, size = 0x4, offset = 0x4, fixed_abs, tag = 'smem constant byte address 0x4 - core index']
  #allocation1 [shape = 'u32[144,128]{1,0:T(1,128)}', space=vmem, size = 0x12000, scoped, tag = 'internal scratch']
  %s0 = inlined_call_operand.hbm [shape: f32[8,32], index: 0, kind: input, shape index: {}]
  %s1 = inlined_call_operand.hbm [shape: f32[288,128], index: 1, kind: input, shape index: {}]
  %s2 = inlined_call_operand.hbm [shape: f32[3,128], index: 2, kind: input, shape index: {}]
  %s3 = inlined_call_operand.hbm [shape: f32[8,128], index: 3, kind: output, shape index: {}]
  %s4 = sld [smem:[#allocation0]]
  $region34: #{tpu_custom_call.1} parent=0
    _
  %s6 = ssub.s32 1, %s4
  %s7 = scalar_select 0, %s6, %s4
  $region1: #{tpu_custom_call.1} parent=0
    #allocation2 [shape = 'u8[4096]{0}', space=vmem, size = 0x1000, scoped, tag = 'input window, operand 0, single buffered']
    #allocation3 [shape = 's32[1]{0}', space=sflag, size = 0x4, scoped, tag = 'scoped memory for tpu_custom_call.1']
    #allocation4 [shape = 's32[1]{0}', space=sflag, size = 0x4, scoped, tag = 'scoped memory for tpu_custom_call.1']
    #allocation5 [shape = 'u8[147456]{0}', space=vmem, size = 0x24000, scoped, tag = 'input window, operand 1, single buffered']
    #allocation6 [shape = 's32[1]{0}', space=sflag, size = 0x4, scoped, tag = 'scoped memory for tpu_custom_call.1']
    #allocation7 [shape = 'u8[2048]{0}', space=vmem, size = 0x800, scoped, tag = 'input window, operand 2, single buffered']
    #allocation8 [shape = 'u8[4096]{0}', space=vmem, size = 0x1000, scoped, tag = 'output window, operand 0, single buffered']
    %8 = vsyncpa [#allocation3], 0
    %9 = vsyncpa [#allocation6], 0
    %10 = vsyncpa [#allocation4], 0
    // Predicated region
    $region2: #{tpu_custom_call.1} parent=1 // pred_check
      _
    $region3: #{tpu_custom_call.1} parent=1 // pred_check_branch
      %12 = sbr.rel (0) target = $region5
    $region4: #{tpu_custom_call.1} parent=1 // pred_region
      %s14 = ssub.s32 128, 128
      %15 = vsyncadd [#allocation3], %s14
      %s17 = sshll.u32 [#allocation2], 4
      %s18 = int_to_ptr.vmem [resolvable:$true] %s17
      %20 = dma.hbm_to_vmem [thread:$0]  %s0, 128, %s18, [#allocation3]
    $region5: #{tpu_custom_call.1} parent=1 // pred_fallthru
      _
    // Predicated region
    $region6: #{tpu_custom_call.1} parent=1 // pred_check
      _
    $region7: #{tpu_custom_call.1} parent=1 // pred_check_branch
      %22 = sbr.rel (0) target = $region9
    $region8: #{tpu_custom_call.1} parent=1 // pred_region
      %s24 = ssub.s32 4608, 4608
      %25 = vsyncadd [#allocation6], %s24
      %s26 = sshll.u32 [#allocation5], 4
      %s27 = int_to_ptr.vmem [resolvable:$true] %s26
      %32 = dma.hbm_to_vmem [thread:$0]  %s1, 4608, %s27, [#allocation6], 128, 128, 8
    $region9: #{tpu_custom_call.1} parent=1 // pred_fallthru
      _
    // Predicated region
    $region10: #{tpu_custom_call.1} parent=1 // pred_check
      _
    $region11: #{tpu_custom_call.1} parent=1 // pred_check_branch
      %34 = sbr.rel (0) target = $region13
    $region12: #{tpu_custom_call.1} parent=1 // pred_region
      %s36 = ssub.s32 64, 64
      %37 = vsyncadd [#allocation6], %s36
      %s39 = sshll.u32 [#allocation7], 4
      %s40 = int_to_ptr.vmem [resolvable:$true] %s39
      %42 = dma.hbm_to_vmem [thread:$0]  %s2, 64, %s40, [#allocation6]
    $region13: #{tpu_custom_call.1} parent=1 // pred_fallthru
      _
    // Predicated region
    $region14: #{tpu_custom_call.1} parent=1 // pred_check
      _
    $region15: #{tpu_custom_call.1} parent=1 // pred_check_branch
      %44 = sbr.rel (0) target = $region17
    $region16: #{tpu_custom_call.1} parent=1 // pred_region
      %45 = dma.done [#allocation3], 128
    $region17: #{tpu_custom_call.1} parent=1 // pred_fallthru
      _
    // Predicated region
    $region18: #{tpu_custom_call.1} parent=1 // pred_check
      _
    $region19: #{tpu_custom_call.1} parent=1 // pred_check_branch
      %47 = sbr.rel (0) target = $region21
    $region20: #{tpu_custom_call.1} parent=1 // pred_region
      %48 = dma.done [#allocation6], 4608
    $region21: #{tpu_custom_call.1} parent=1 // pred_fallthru
      _
    // Predicated region
    $region22: #{tpu_custom_call.1} parent=1 // pred_check
      _
    $region23: #{tpu_custom_call.1} parent=1 // pred_check_branch
      %50 = sbr.rel (0) target = $region25
    $region24: #{tpu_custom_call.1} parent=1 // pred_region
      %51 = dma.done [#allocation6], 64
    $region25: #{tpu_custom_call.1} parent=1 // pred_fallthru
      _
    %v52 = vld [vmem:[#allocation2] sm:$0xff]
    %v53 = vld [vmem:[#allocation5] sm:$0xff]
    %v54 = vld [vmem:[#allocation5 + $0x8] sm:$0xff]
    %v55 = vld [vmem:[#allocation5 + $0x10] sm:$0xff]
    %v56 = vld [vmem:[#allocation5 + $0x18] sm:$0xff]
    %v57 = vld [vmem:[#allocation5 + $0x20] sm:$0xff]
    %v58 = vld [vmem:[#allocation5 + $0x28] sm:$0xff]
    %v59 = vld [vmem:[#allocation5 + $0x30] sm:$0xff]
    %v60 = vld [vmem:[#allocation5 + $0x38] sm:$0xff]
    %v61 = vld [vmem:[#allocation5 + $0x40] sm:$0xff]
    %v62 = vld [vmem:[#allocation5 + $0x48] sm:$0xff]
    %v63 = vld [vmem:[#allocation5 + $0x50] sm:$0xff]
    %v64 = vld [vmem:[#allocation5 + $0x58] sm:$0xff]
    %v65 = vld [vmem:[#allocation5 + $0x60] sm:$0xff]
    %v66 = vld [vmem:[#allocation5 + $0x68] sm:$0xff]
    %v67 = vld [vmem:[#allocation5 + $0x70] sm:$0xff]
    %v68 = vld [vmem:[#allocation5 + $0x78] sm:$0xff]
    %v69 = vld [vmem:[#allocation5 + $0x80] sm:$0xff]
    %v70 = vld [vmem:[#allocation5 + $0x88] sm:$0xff]
    %v71 = vld [vmem:[#allocation5 + $0x90] sm:$0xff]
    %v72 = vld [vmem:[#allocation5 + $0x98] sm:$0xff]
    %v73 = vld [vmem:[#allocation5 + $0xa0] sm:$0xff]
    %v74 = vld [vmem:[#allocation5 + $0xa8] sm:$0xff]
    %v75 = vld [vmem:[#allocation5 + $0xb0] sm:$0xff]
    %v76 = vld [vmem:[#allocation5 + $0xb8] sm:$0xff]
    %v77 = vld [vmem:[#allocation5 + $0xc0] sm:$0xff]
    %v78 = vld [vmem:[#allocation5 + $0xc8] sm:$0xff]
    %v79 = vld [vmem:[#allocation5 + $0xd0] sm:$0xff]
    %v80 = vld [vmem:[#allocation5 + $0xd8] sm:$0xff]
    %v81 = vld [vmem:[#allocation5 + $0xe0] sm:$0xff]
    %v82 = vld [vmem:[#allocation5 + $0xe8] sm:$0xff]
    %v83 = vld [vmem:[#allocation5 + $0xf0] sm:$0xff]
    %v84 = vld [vmem:[#allocation5 + $0xf8] sm:$0xff]
    %v85 = vld [vmem:[#allocation5 + $0x100] sm:$0xff]
    %v86 = vld [vmem:[#allocation5 + $0x108] sm:$0xff]
    %v87 = vld [vmem:[#allocation5 + $0x110] sm:$0xff]
    %v88 = vld [vmem:[#allocation5 + $0x118] sm:$0xff]
    %v89 = vld [vmem:[#allocation7] sm:$0x1]
    %v90 = vlaneseq
    %v91 = vshrl.u32 %v90, 7
    %v92 = vsub.s32 0, %v91
    %v93 = vrot.slane %v89, %v92
    %vm94 = vcmask 261120
    %v96 = vsel %vm94, %v52, 0
    %98 = vmatprep.subr.mxu0 0.0
    %99 = vmatpush1.msra.mxu0 0.0
    %100 = vmatprep.subr.mxu0 0.0
    %101 = vmatpush1.msra.mxu0 0.0
    %102 = vmatprep.subr.mxu0 0.0
    %103 = vmatpush1.msra.mxu0 0.0
    %104 = vmatprep.subr.mxu0 0.0
    %105 = vmatpush1.msra.mxu0 0.0
    %106 = vmatprep.subr.mxu0 0.0
    %107 = vmatpush1.msra.mxu0 0.0
    %108 = vmatprep.subr.mxu0 0.0
    %109 = vmatpush1.msra.mxu0 0.0
    %110 = vmatprep.subr.mxu0 0.0
    %111 = vmatpush1.msra.mxu0 0.0
    %112 = vmatprep.subr.mxu0 0.0
    %113 = vmatpush1.msra.mxu0 0.0
    %114 = vmatprep.subr.mxu0 0.0
    %115 = vmatpush1.msra.mxu0 0.0
    %116 = vmatprep.subr.mxu0 0.0
    %117 = vmatpush1.msra.mxu0 0.0
    %118 = vmatprep.subr.mxu0 0.0
    %119 = vmatpush1.msra.mxu0 0.0
    %120 = vmatprep.subr.mxu0 0.0
    %121 = vmatpush1.msra.mxu0 0.0
    %122 = vmatprep.subr.mxu0 0.0
    %123 = vmatpush1.msra.mxu0 %v56
    %124 = vmatprep.subr.mxu0 0.0
    %125 = vmatpush1.msra.mxu0 %v55
    %126 = vmatprep.subr.mxu0 0.0
    %127 = vmatpush1.msra.mxu0 %v54
    %128 = vmatprep.subr.mxu0 0.0
    %129 = vmatpush1.msra.mxu0 %v53
    %130 = vmatprep.subr.mxu0 0.0
    %131 = vmatpush2.msra.mxu0 0.0
    %132 = vmatprep.subr.mxu0 0.0
    %133 = vmatpush2.msra.mxu0 0.0
    %134 = vmatprep.subr.mxu0 0.0
    %135 = vmatpush2.msra.mxu0 0.0
    %136 = vmatprep.subr.mxu0 0.0
    %137 = vmatpush2.msra.mxu0 0.0
    %138 = vmatprep.subr.mxu0 0.0
    %139 = vmatpush2.msra.mxu0 0.0
    %140 = vmatprep.subr.mxu0 0.0
    %141 = vmatpush2.msra.mxu0 0.0
    %142 = vmatprep.subr.mxu0 0.0
    %143 = vmatpush2.msra.mxu0 0.0
    %144 = vmatprep.subr.mxu0 0.0
    %145 = vmatpush2.msra.mxu0 0.0
    %146 = vmatprep.subr.mxu0 0.0
    %147 = vmatpush2.msra.mxu0 0.0
    %148 = vmatprep.subr.mxu0 0.0
    %149 = vmatpush2.msra.mxu0 0.0
    %150 = vmatprep.subr.mxu0 0.0
    %151 = vmatpush2.msra.mxu0 0.0
    %152 = vmatprep.subr.mxu0 0.0
    %153 = vmatpush2.msra.mxu0 0.0
    %154 = vmatprep.subr.mxu0 0.0
    %155 = vmatpush2.msra.mxu0 0.0
    %156 = vmatprep.subr.mxu0 0.0
    %157 = vmatpush2.msra.mxu0 0.0
    %158 = vmatprep.subr.mxu0 0.0
    %159 = vmatpush2.msra.mxu0 0.0
    %160 = vmatprep.subr.mxu0 0.0
    %161 = vmatpush2.msra.mxu0 0.0
    %162 = vmatprep.mubr.f32.mxu0 0.0
    %163 = vmatmul.mubr.f32.gmra.mxu0 %v96
    %v164 = vpop.f32.mrf.mxu0
    %v165 = vadd.f32 %v93, %v164
    %v166 = vpop.f32.mrf.mxu0
    %167 = vdwg.mxu0
    %vm168 = vcmp.gt.f32.partialorder %v165, 0.0
    %v169 = vmul.f32 %v165, 0.01
    %v170 = vsel %vm168, %v165, %v169
    %v171 = vld [vmem:[#allocation7 + $0x1] sm:$0x1]
    %v172 = vlaneseq
    %v173 = vshrl.u32 %v172, 7
    %v174 = vsub.s32 0, %v173
    %v175 = vrot.slane %v171, %v174
    %176 = vmatprep.subr.mxu0 0.0
    %177 = vmatpush1.msra.mxu0 %v72
    %178 = vmatprep.subr.mxu0 0.0
    %179 = vmatpush1.msra.mxu0 %v71
    %180 = vmatprep.subr.mxu0 0.0
    %181 = vmatpush1.msra.mxu0 %v70
    %182 = vmatprep.subr.mxu0 0.0
    %183 = vmatpush1.msra.mxu0 %v69
    %184 = vmatprep.subr.mxu0 0.0
    %185 = vmatpush1.msra.mxu0 %v68
    %186 = vmatprep.subr.mxu0 0.0
    %187 = vmatpush1.msra.mxu0 %v67
    %188 = vmatprep.subr.mxu0 0.0
    %189 = vmatpush1.msra.mxu0 %v66
    %190 = vmatprep.subr.mxu0 0.0
    %191 = vmatpush1.msra.mxu0 %v65
    %192 = vmatprep.subr.mxu0 0.0
    %193 = vmatpush1.msra.mxu0 %v64
    %194 = vmatprep.subr.mxu0 0.0
    %195 = vmatpush1.msra.mxu0 %v63
    %196 = vmatprep.subr.mxu0 0.0
    %197 = vmatpush1.msra.mxu0 %v62
    %198 = vmatprep.subr.mxu0 0.0
    %199 = vmatpush1.msra.mxu0 %v61
    %200 = vmatprep.subr.mxu0 0.0
    %201 = vmatpush1.msra.mxu0 %v60
    %202 = vmatprep.subr.mxu0 0.0
    %203 = vmatpush1.msra.mxu0 %v59
    %204 = vmatprep.subr.mxu0 0.0
    %205 = vmatpush1.msra.mxu0 %v58
    %206 = vmatprep.subr.mxu0 0.0
    %207 = vmatpush1.msra.mxu0 %v57
    %208 = vmatprep.subr.mxu0 0.0
    %209 = vmatpush2.msra.mxu0 0.0
    %210 = vmatprep.subr.mxu0 0.0
    %211 = vmatpush2.msra.mxu0 0.0
    %212 = vmatprep.subr.mxu0 0.0
    %213 = vmatpush2.msra.mxu0 0.0
    %214 = vmatprep.subr.mxu0 0.0
    %215 = vmatpush2.msra.mxu0 0.0
    %216 = vmatprep.subr.mxu0 0.0
    %217 = vmatpush2.msra.mxu0 0.0
    %218 = vmatprep.subr.mxu0 0.0
    %219 = vmatpush2.msra.mxu0 0.0
    %220 = vmatprep.subr.mxu0 0.0
    %221 = vmatpush2.msra.mxu0 0.0
    %222 = vmatprep.subr.mxu0 0.0
    %223 = vmatpush2.msra.mxu0 0.0
    %224 = vmatprep.subr.mxu0 0.0
    %225 = vmatpush2.msra.mxu0 0.0
    %226 = vmatprep.subr.mxu0 0.0
    %227 = vmatpush2.msra.mxu0 0.0
    %228 = vmatprep.subr.mxu0 0.0
    %229 = vmatpush2.msra.mxu0 0.0
    %230 = vmatprep.subr.mxu0 0.0
    %231 = vmatpush2.msra.mxu0 0.0
    %232 = vmatprep.subr.mxu0 0.0
    %233 = vmatpush2.msra.mxu0 0.0
    %234 = vmatprep.subr.mxu0 0.0
    %235 = vmatpush2.msra.mxu0 0.0
    %236 = vmatprep.subr.mxu0 0.0
    %237 = vmatpush2.msra.mxu0 0.0
    %238 = vmatprep.subr.mxu0 0.0
    %239 = vmatpush2.msra.mxu0 0.0
    %240 = vmatprep.mubr.f32.mxu0 0.0
    %241 = vmatmul.mubr.f32.gmra.mxu0 %v170
    %v242 = vpop.f32.mrf.mxu0
    %v243 = vadd.f32 %v175, %v242
    %v244 = vpop.f32.mrf.mxu0
    %245 = vdwg.mxu0
    %vm246 = vcmp.gt.f32.partialorder %v243, 0.0
    %v247 = vmul.f32 %v243, 0.01
    %v248 = vsel %vm246, %v243, %v247
    %v249 = vld [vmem:[#allocation7 + $0x2] sm:$0x1]
    %v250 = vlaneseq
    %v251 = vshrl.u32 %v250, 7
    %v252 = vsub.s32 0, %v251
    %v253 = vrot.slane %v249, %v252
    %254 = vmatprep.subr.mxu0 0.0
    %255 = vmatpush1.msra.mxu0 %v88
    %256 = vmatprep.subr.mxu0 0.0
    %257 = vmatpush1.msra.mxu0 %v87
    %258 = vmatprep.subr.mxu0 0.0
    %259 = vmatpush1.msra.mxu0 %v86
    %260 = vmatprep.subr.mxu0 0.0
    %261 = vmatpush1.msra.mxu0 %v85
    %262 = vmatprep.subr.mxu0 0.0
    %263 = vmatpush1.msra.mxu0 %v84
    %264 = vmatprep.subr.mxu0 0.0
    %265 = vmatpush1.msra.mxu0 %v83
    %266 = vmatprep.subr.mxu0 0.0
    %267 = vmatpush1.msra.mxu0 %v82
    %268 = vmatprep.subr.mxu0 0.0
    %269 = vmatpush1.msra.mxu0 %v81
    %270 = vmatprep.subr.mxu0 0.0
    %271 = vmatpush1.msra.mxu0 %v80
    %272 = vmatprep.subr.mxu0 0.0
    %273 = vmatpush1.msra.mxu0 %v79
    %274 = vmatprep.subr.mxu0 0.0
    %275 = vmatpush1.msra.mxu0 %v78
    %276 = vmatprep.subr.mxu0 0.0
    %277 = vmatpush1.msra.mxu0 %v77
    %278 = vmatprep.subr.mxu0 0.0
    %279 = vmatpush1.msra.mxu0 %v76
    %280 = vmatprep.subr.mxu0 0.0
    %281 = vmatpush1.msra.mxu0 %v75
    %282 = vmatprep.subr.mxu0 0.0
    %283 = vmatpush1.msra.mxu0 %v74
    %284 = vmatprep.subr.mxu0 0.0
    %285 = vmatpush1.msra.mxu0 %v73
    %286 = vmatprep.subr.mxu0 0.0
    %287 = vmatpush2.msra.mxu0 0.0
    %288 = vmatprep.subr.mxu0 0.0
    %289 = vmatpush2.msra.mxu0 0.0
    %290 = vmatprep.subr.mxu0 0.0
    %291 = vmatpush2.msra.mxu0 0.0
    %292 = vmatprep.subr.mxu0 0.0
    %293 = vmatpush2.msra.mxu0 0.0
    %294 = vmatprep.subr.mxu0 0.0
    %295 = vmatpush2.msra.mxu0 0.0
    %296 = vmatprep.subr.mxu0 0.0
    %297 = vmatpush2.msra.mxu0 0.0
    %298 = vmatprep.subr.mxu0 0.0
    %299 = vmatpush2.msra.mxu0 0.0
    %300 = vmatprep.subr.mxu0 0.0
    %301 = vmatpush2.msra.mxu0 0.0
    %302 = vmatprep.subr.mxu0 0.0
    %303 = vmatpush2.msra.mxu0 0.0
    %304 = vmatprep.subr.mxu0 0.0
    %305 = vmatpush2.msra.mxu0 0.0
    %306 = vmatprep.subr.mxu0 0.0
    %307 = vmatpush2.msra.mxu0 0.0
    %308 = vmatprep.subr.mxu0 0.0
    %309 = vmatpush2.msra.mxu0 0.0
    %310 = vmatprep.subr.mxu0 0.0
    %311 = vmatpush2.msra.mxu0 0.0
    %312 = vmatprep.subr.mxu0 0.0
    %313 = vmatpush2.msra.mxu0 0.0
    %314 = vmatprep.subr.mxu0 0.0
    %315 = vmatpush2.msra.mxu0 0.0
    %316 = vmatprep.subr.mxu0 0.0
    %317 = vmatpush2.msra.mxu0 0.0
    %318 = vmatprep.mubr.f32.mxu0 0.0
    %319 = vmatmul.mubr.f32.gmra.mxu0 %v248
    %v320 = vpop.f32.mrf.mxu0
    %v321 = vadd.f32 %v253, %v320
    %v322 = vpop.f32.mrf.mxu0
    %323 = vdwg.mxu0
    %v324 = vlaneseq
    %v325 = vand.u32 %v324, 127
    %vm326 = vcmp.ge.s32.totalorder %v325, 2
    %v327 = vmax.f32 %v321, -20.0
    %v328 = vmin.f32 %v327, 2.0
    %v329 = vsel %vm326, %v328, %v321
    %330 = vst [vmem:[#allocation8] sm:$0xff] %v329
    // Predicated region
    $region26: #{tpu_custom_call.1} parent=1 // pred_check
      _
    $region27: #{tpu_custom_call.1} parent=1 // pred_check_branch
      %332 = sbr.rel (0) target = $region29
    $region28: #{tpu_custom_call.1} parent=1 // pred_region
      %s334 = ssub.s32 128, 128
      %335 = vsyncadd [#allocation4], %s334
      %s337 = sshll.u32 [#allocation8], 4
      %s338 = int_to_ptr.vmem [resolvable:$true] %s337
      %340 = dma.vmem_to_hbm [thread:$0]  %s338, 128, %s3, [#allocation4]
    $region29: #{tpu_custom_call.1} parent=1 // pred_fallthru
      _
    // Predicated region
    $region30: #{tpu_custom_call.1} parent=1 // pred_check
      _
    $region31: #{tpu_custom_call.1} parent=1 // pred_check_branch
      %342 = sbr.rel (0) target = $region33
    $region32: #{tpu_custom_call.1} parent=1 // pred_region
      %343 = dma.done [#allocation4], 128
    $region33: #{tpu_custom_call.1} parent=1 // pred_fallthru
      _
    %344 = vsyncpa [#allocation3], 1
    %345 = vsyncpa [#allocation6], 1
    %346 = vsyncpa [#allocation4], 1

</llo_original>
